<compile_context>
chip_gen: v6e
topology: v6e:2x2x1
jax: 0.10.0
libtpu: 0.0.40
codegen_flags: <defaults>
</compile_context>

<pallas_src>
import functools
import math

import jax
import jax.numpy as jnp
from jax.experimental import pallas as pl
from jax.experimental.pallas import tpu as pltpu


def _round_up(x, m):
    return (x + m - 1) // m * m


def _gelu_exact(x):
    # BERT gelu: x * 0.5 * (1 + erf(x / sqrt(2)))  (exact erf form, matches module_decoder.py)
    return x * 0.5 * (1.0 + jax.lax.erf(x * (1.0 / math.sqrt(2.0))))


def _decoder_cls_kernel(x_ref, dw_ref, db_ref, g_ref, b_ref, decw_ref, decb_ref,
                        out_ref, h_scratch, *, eps):
    # grid = (num_row_tiles, num_vocab_tiles); vocab axis MUST be the inner axis:
    # the transformed hidden tile is cached in VMEM scratch and carried across all
    # vocab tiles of the current row tile.
    @pl.when(pl.program_id(1) == 0)
    def _():
        # dense: x (tm, H) @ W^T with W stored PyTorch-style (out, in) = (H, H).
        # Contract dim 1 of x with dim 1 of W == x @ W.T, no host transpose needed.
        h = jax.lax.dot_general(
            x_ref[...], dw_ref[...],
            dimension_numbers=(((1,), (1,)), ((), ())),
            preferred_element_type=jnp.float32)
        h = h + db_ref[...]
        h = _gelu_exact(h)                                      # exact erf GELU (f32)
        # LayerNorm over the hidden dim, eps = 1e-12 (f32)
        mu = jnp.mean(h, axis=-1, keepdims=True)
        var = jnp.mean((h - mu) * (h - mu), axis=-1, keepdims=True)
        h = (h - mu) * jax.lax.rsqrt(var + eps)
        h = h * g_ref[...] + b_ref[...]
        h_scratch[...] = h.astype(h_scratch.dtype)

    # decoder projection: h (tm, H) @ decoder_w.T, decoder_w streamed as (tv, H) tiles.
    logits = jax.lax.dot_general(
        h_scratch[...], decw_ref[...],
        dimension_numbers=(((1,), (1,)), ((), ())),
        preferred_element_type=jnp.float32)
    out_ref[...] = (logits + decb_ref[...]).astype(out_ref.dtype)


def decoder_classifier(hidden_states, params, *, tm=256, tv=1024,
                       matmul_dtype=jnp.bfloat16, eps=1e-12,
                       vmem_limit_bytes=48 * 1024 * 1024):
    """hidden_states: (B, S, H) f32 -> (B, S, V) f32 logits.

    tm / tv are upper bounds on the row / vocab tile and are clipped to the problem
    size.  Suggested: v5e tm=128, tv=512; v6e tm=256, tv=1024-2048 (raise
    vmem_limit_bytes accordingly); v7x tm=256, tv<=1024 with the 48 MiB default.
    """
    B, S, H = hidden_states.shape
    V = params["decoder_w"].shape[0]          # tied embedding weights: (V, H)
    M = B * S

    # Clip tiles to the problem size, keeping sublane/lane alignment.
    tm = int(min(tm, _round_up(M, 8)))
    tv = int(min(tv, _round_up(V, 128)))

    # Pad rows (cheap: activations only) so the row grid divides exactly.
    M_pad = _round_up(M, tm)
    x2d = hidden_states.reshape(M, H).astype(matmul_dtype)
    if M_pad != M:
        x2d = jnp.pad(x2d, ((0, M_pad - M), (0, 0)))

    dense_w = params["dense_w"].astype(matmul_dtype)             # (H, H), (out, in)
    dense_b = params["dense_b"].reshape(1, H).astype(jnp.float32)
    gamma = params["ln_gamma"].reshape(1, H).astype(jnp.float32)
    beta = params["ln_beta"].reshape(1, H).astype(jnp.float32)
    dec_w = params["decoder_w"].astype(matmul_dtype)             # (V, H), NOT transposed
    dec_b = params["decoder_b"].reshape(1, V).astype(jnp.float32)

    # Vocab axis uses cdiv: the last vocab tile may overhang V; out-of-bounds decoder
    # rows / bias lanes only feed output columns that are never written back, so no
    # host padding of the (large) decoder weight is needed.
    grid = (M_pad // tm, pl.cdiv(V, tv))

    out = pl.pallas_call(
        functools.partial(_decoder_cls_kernel, eps=eps),
        out_shape=jax.ShapeDtypeStruct((M_pad, V), jnp.float32),
        grid_spec=pltpu.PrefetchScalarGridSpec(
            num_scalar_prefetch=0,
            grid=grid,
            in_specs=[
                pl.BlockSpec((tm, H), lambda i, j: (i, 0)),   # x row tile
                pl.BlockSpec((H, H), lambda i, j: (0, 0)),    # dense weight (out, in)
                pl.BlockSpec((1, H), lambda i, j: (0, 0)),    # dense bias
                pl.BlockSpec((1, H), lambda i, j: (0, 0)),    # LN gamma
                pl.BlockSpec((1, H), lambda i, j: (0, 0)),    # LN beta
                pl.BlockSpec((tv, H), lambda i, j: (j, 0)),   # decoder weight tile (V-major)
                pl.BlockSpec((1, tv), lambda i, j: (0, j)),   # decoder bias tile
            ],
            out_specs=pl.BlockSpec((tm, tv), lambda i, j: (i, j)),
            scratch_shapes=[pltpu.VMEM((tm, H), matmul_dtype)],
        ),
        compiler_params=pltpu.CompilerParams(
            dimension_semantics=("parallel", "arbitrary"),
            vmem_limit_bytes=vmem_limit_bytes),
    )(x2d, dense_w, dense_b, gamma, beta, dec_w, dec_b)

    return out[:M].reshape(B, S, V)


def _reference(hidden_states, params, eps=1e-12):
    hp = jax.lax.Precision.HIGHEST
    h = jnp.einsum("bsh,oh->bso", hidden_states, params["dense_w"],
                   precision=hp) + params["dense_b"]
    h = _gelu_exact(h)
    mu = jnp.mean(h, axis=-1, keepdims=True)
    var = jnp.mean((h - mu) ** 2, axis=-1, keepdims=True)
    h = (h - mu) / jnp.sqrt(var + eps)
    h = h * params["ln_gamma"] + params["ln_beta"]
    return jnp.einsum("bsh,vh->bsv", h, params["decoder_w"],
                      precision=hp) + params["decoder_b"]


def _make_params(key, H, V):
    k_dw, k_db, k_g, k_b, k_emb = jax.random.split(key, 5)
    return {
        "dense_w": jax.random.normal(k_dw, (H, H), dtype=jnp.float32) * 0.05,    # nn.Linear(H, H).weight
        "dense_b": jax.random.normal(k_db, (H,), dtype=jnp.float32) * 0.05,      # nn.Linear(H, H).bias
        "ln_gamma": jnp.ones((H,), dtype=jnp.float32)
                    + 0.1 * jax.random.normal(k_g, (H,), dtype=jnp.float32),     # LayerNorm.weight
        "ln_beta": 0.1 * jax.random.normal(k_b, (H,), dtype=jnp.float32),        # LayerNorm.bias
        "decoder_w": jax.random.normal(k_emb, (V, H), dtype=jnp.float32) * 0.05,  # tied embedding (V, H)
        "decoder_b": jnp.zeros((V,), dtype=jnp.float32),                          # prediction-head bias
    }


if __name__ == "__main__":
    key = jax.random.PRNGKey(0)
    k_x, k_p, k_x2, k_p2 = jax.random.split(key, 4)

    # Case 1: small shapes, f32 matmul operands.
    # (MXU f32 passes can differ slightly from the XLA HIGHEST-precision reference,
    #  so the tolerance is modest but far below any structural-bug magnitude.)
    B, S, H, V = 2, 8, 32, 256
    hidden_states = jax.random.normal(k_x, (B, S, H), dtype=jnp.float32)
    params = _make_params(k_p, H, V)

    out_f32 = decoder_classifier(hidden_states, params, matmul_dtype=jnp.float32)
    out_f32 = jax.block_until_ready(out_f32)
    ref = _reference(hidden_states, params)
    assert out_f32.shape == (B, S, V)
    assert bool(jnp.all(jnp.isfinite(out_f32))), "non-finite logits (f32 path)"
    assert jnp.allclose(out_f32, ref, rtol=2e-2, atol=2e-2), "f32 mismatch vs reference"

    # Case 2: same shapes, bf16 matmul operands (perf path) -> loose tolerance.
    out_bf16 = decoder_classifier(hidden_states, params, matmul_dtype=jnp.bfloat16)
    out_bf16 = jax.block_until_ready(out_bf16)
    assert bool(jnp.all(jnp.isfinite(out_bf16))), "non-finite logits (bf16 path)"
    assert jnp.allclose(out_bf16, ref, rtol=6e-2, atol=6e-2), "bf16 mismatch vs reference"

    # Case 3: vocab not a multiple of the vocab tile (masked boundary tile), f32.
    V2 = 320
    hidden_states2 = jax.random.normal(k_x2, (B, S, H), dtype=jnp.float32)
    params2 = _make_params(k_p2, H, V2)
    out2 = decoder_classifier(hidden_states2, params2, tv=256, matmul_dtype=jnp.float32)
    out2 = jax.block_until_ready(out2)
    ref2 = _reference(hidden_states2, params2)
    assert out2.shape == (B, S, V2)
    assert bool(jnp.all(jnp.isfinite(out2))), "non-finite logits (ragged-vocab path)"
    assert jnp.allclose(out2, ref2, rtol=2e-2, atol=2e-2), "ragged-vocab mismatch vs reference"

    print("KERNEL_OK")
</pallas_src>

<mosaic_0001>
module attributes {stable_mosaic.version = 11 : i64} {
  func.func @_decoder_cls_kernel(%arg0: i32, %arg1: i32, %arg2: memref<16x32xf32, #tpu.memory_space<vmem>>, %arg3: memref<32x32xf32, #tpu.memory_space<vmem>>, %arg4: memref<1x32xf32, #tpu.memory_space<vmem>>, %arg5: memref<1x32xf32, #tpu.memory_space<vmem>>, %arg6: memref<1x32xf32, #tpu.memory_space<vmem>>, %arg7: memref<256x32xf32, #tpu.memory_space<vmem>>, %arg8: memref<1x256xf32, #tpu.memory_space<vmem>>, %arg9: memref<16x256xf32, #tpu.memory_space<vmem>>, %arg10: memref<16x32xf32, #tpu.memory_space<vmem>>) attributes {dimension_semantics = [#tpu.dimension_semantics<parallel>, #tpu.dimension_semantics<arbitrary>], iteration_bounds = array<i64: 1, 1>, scalar_prefetch = 0 : i64, scratch_operands = 1 : i64, tpu.core_type = #tpu.core_type<tc>, window_params = [{transform_indices = @transform_0, window_bounds = array<i64: 16, 32>}, {pipeline_mode = #tpu.pipeline_mode<synchronous>, transform_indices = @transform_1, window_bounds = array<i64: 32, 32>}, {pipeline_mode = #tpu.pipeline_mode<synchronous>, transform_indices = @transform_2, window_bounds = array<i64: 1, 32>}, {pipeline_mode = #tpu.pipeline_mode<synchronous>, transform_indices = @transform_3, window_bounds = array<i64: 1, 32>}, {pipeline_mode = #tpu.pipeline_mode<synchronous>, transform_indices = @transform_4, window_bounds = array<i64: 1, 32>}, {transform_indices = @transform_5, window_bounds = array<i64: 256, 32>}, {transform_indices = @transform_6, window_bounds = array<i64: 1, 256>}, {transform_indices = @transform_7, window_bounds = array<i64: 16, 256>}]} {
    %c0_i32 = arith.constant 0 : i32
    %0 = arith.cmpi eq, %arg1, %c0_i32 : i32
    %1 = arith.extui %0 : i1 to i32
    %c0_i32_0 = arith.constant 0 : i32
    %2 = arith.cmpi ne, %1, %c0_i32_0 : i32
    scf.if %2 {
      %c0_8 = arith.constant 0 : index
      %c0_9 = arith.constant 0 : index
      %10 = vector.load %arg2[%c0_8, %c0_9] : memref<16x32xf32, #tpu.memory_space<vmem>>, vector<16x32xf32>
      %c0_10 = arith.constant 0 : index
      %c0_11 = arith.constant 0 : index
      %11 = vector.load %arg3[%c0_10, %c0_11] : memref<32x32xf32, #tpu.memory_space<vmem>>, vector<32x32xf32>
      %cst_12 = arith.constant dense<0.000000e+00> : vector<16x32xf32>
      %12 = tpu.matmul %10, %11, %cst_12 {dimension_numbers = #tpu.dot_dimension_numbers<[1], [1], [0], [0], [0, 0, 1, 0], [], []>} : vector<16x32xf32>, vector<32x32xf32>, vector<16x32xf32> -> vector<16x32xf32>
      %c0_13 = arith.constant 0 : index
      %c0_14 = arith.constant 0 : index
      %13 = vector.load %arg4[%c0_13, %c0_14] : memref<1x32xf32, #tpu.memory_space<vmem>>, vector<1x32xf32>
      %14 = vector.broadcast %13 : vector<1x32xf32> to vector<16x32xf32>
      %15 = arith.addf %12, %14 : vector<16x32xf32>
      %cst_15 = arith.constant 5.000000e-01 : f32
      %16 = vector.broadcast %cst_15 : f32 to vector<16x32xf32>
      %17 = arith.mulf %15, %16 : vector<16x32xf32>
      %cst_16 = arith.constant 0.707106769 : f32
      %18 = vector.broadcast %cst_16 : f32 to vector<16x32xf32>
      %19 = arith.mulf %15, %18 : vector<16x32xf32>
      %20 = math.erf %19 : vector<16x32xf32>
      %cst_17 = arith.constant 1.000000e+00 : f32
      %21 = vector.broadcast %cst_17 : f32 to vector<16x32xf32>
      %22 = arith.addf %21, %20 : vector<16x32xf32>
      %23 = arith.mulf %17, %22 : vector<16x32xf32>
      %cst_18 = arith.constant dense<0.000000e+00> : vector<16xf32>
      %24 = vector.multi_reduction <add>, %23, %cst_18 [1] : vector<16x32xf32> to vector<16xf32>
      %25 = vector.shape_cast %24 : vector<16xf32> to vector<16x1xf32>
      %cst_19 = arith.constant 3.200000e+01 : f32
      %26 = vector.broadcast %cst_19 : f32 to vector<16x1xf32>
      %27 = arith.divf %25, %26 : vector<16x1xf32>
      %28 = vector.broadcast %27 : vector<16x1xf32> to vector<16x32xf32>
      %29 = arith.subf %23, %28 : vector<16x32xf32>
      %30 = vector.broadcast %27 : vector<16x1xf32> to vector<16x32xf32>
      %31 = arith.subf %23, %30 : vector<16x32xf32>
      %32 = arith.mulf %29, %31 : vector<16x32xf32>
      %cst_20 = arith.constant dense<0.000000e+00> : vector<16xf32>
      %33 = vector.multi_reduction <add>, %32, %cst_20 [1] : vector<16x32xf32> to vector<16xf32>
      %34 = vector.shape_cast %33 : vector<16xf32> to vector<16x1xf32>
      %cst_21 = arith.constant 3.200000e+01 : f32
      %35 = vector.broadcast %cst_21 : f32 to vector<16x1xf32>
      %36 = arith.divf %34, %35 : vector<16x1xf32>
      %37 = vector.broadcast %27 : vector<16x1xf32> to vector<16x32xf32>
      %38 = arith.subf %23, %37 : vector<16x32xf32>
      %cst_22 = arith.constant 9.99999996E-13 : f32
      %39 = vector.broadcast %cst_22 : f32 to vector<16x1xf32>
      %40 = arith.addf %36, %39 : vector<16x1xf32>
      %41 = math.rsqrt %40 : vector<16x1xf32>
      %42 = vector.broadcast %41 : vector<16x1xf32> to vector<16x32xf32>
      %43 = arith.mulf %38, %42 : vector<16x32xf32>
      %c0_23 = arith.constant 0 : index
      %c0_24 = arith.constant 0 : index
      %44 = vector.load %arg5[%c0_23, %c0_24] : memref<1x32xf32, #tpu.memory_space<vmem>>, vector<1x32xf32>
      %45 = vector.broadcast %44 : vector<1x32xf32> to vector<16x32xf32>
      %46 = arith.mulf %43, %45 : vector<16x32xf32>
      %c0_25 = arith.constant 0 : index
      %c0_26 = arith.constant 0 : index
      %47 = vector.load %arg6[%c0_25, %c0_26] : memref<1x32xf32, #tpu.memory_space<vmem>>, vector<1x32xf32>
      %48 = vector.broadcast %47 : vector<1x32xf32> to vector<16x32xf32>
      %49 = arith.addf %46, %48 : vector<16x32xf32>
      %c0_27 = arith.constant 0 : index
      %c0_28 = arith.constant 0 : index
      %50 = vector.load %arg10[%c0_27, %c0_28] : memref<16x32xf32, #tpu.memory_space<vmem>>, vector<16x32xf32>
      tpu.vector_store %arg10[%c0_27, %c0_28], %49 {strides = array<i32>} : memref<16x32xf32, #tpu.memory_space<vmem>>, vector<16x32xf32>,
    } else {
    }
    %c0 = arith.constant 0 : index
    %c0_1 = arith.constant 0 : index
    %3 = vector.load %arg10[%c0, %c0_1] : memref<16x32xf32, #tpu.memory_space<vmem>>, vector<16x32xf32>
    %c0_2 = arith.constant 0 : index
    %c0_3 = arith.constant 0 : index
    %4 = vector.load %arg7[%c0_2, %c0_3] : memref<256x32xf32, #tpu.memory_space<vmem>>, vector<256x32xf32>
    %cst = arith.constant dense<0.000000e+00> : vector<16x256xf32>
    %5 = tpu.matmul %3, %4, %cst {dimension_numbers = #tpu.dot_dimension_numbers<[1], [1], [0], [0], [0, 0, 1, 0], [], []>} : vector<16x32xf32>, vector<256x32xf32>, vector<16x256xf32> -> vector<16x256xf32>
    %c0_4 = arith.constant 0 : index
    %c0_5 = arith.constant 0 : index
    %6 = vector.load %arg8[%c0_4, %c0_5] : memref<1x256xf32, #tpu.memory_space<vmem>>, vector<1x256xf32>
    %7 = vector.broadcast %6 : vector<1x256xf32> to vector<16x256xf32>
    %8 = arith.addf %5, %7 : vector<16x256xf32>
    %c0_6 = arith.constant 0 : index
    %c0_7 = arith.constant 0 : index
    %9 = vector.load %arg9[%c0_6, %c0_7] : memref<16x256xf32, #tpu.memory_space<vmem>>, vector<16x256xf32>
    tpu.vector_store %arg9[%c0_6, %c0_7], %8 {strides = array<i32>} : memref<16x256xf32, #tpu.memory_space<vmem>>, vector<16x256xf32>,
    return
  }
  func.func @transform_0(%arg0: i32, %arg1: i32) -> (i32, i32) {
    %c0_i32 = arith.constant 0 : i32
    %c0_i32_0 = arith.constant 0 : i32
    return %arg0, %c0_i32 : i32, i32
  }
  func.func @transform_1(%arg0: i32, %arg1: i32) -> (i32, i32) {
    %c0_i32 = arith.constant 0 : i32
    %c0_i32_0 = arith.constant 0 : i32
    %c0_i32_1 = arith.constant 0 : i32
    return %c0_i32, %c0_i32_0 : i32, i32
  }
  func.func @transform_2(%arg0: i32, %arg1: i32) -> (i32, i32) {
    %c0_i32 = arith.constant 0 : i32
    %c0_i32_0 = arith.constant 0 : i32
    %c0_i32_1 = arith.constant 0 : i32
    return %c0_i32, %c0_i32_0 : i32, i32
  }
  func.func @transform_3(%arg0: i32, %arg1: i32) -> (i32, i32) {
    %c0_i32 = arith.constant 0 : i32
    %c0_i32_0 = arith.constant 0 : i32
    %c0_i32_1 = arith.constant 0 : i32
    return %c0_i32, %c0_i32_0 : i32, i32
  }
  func.func @transform_4(%arg0: i32, %arg1: i32) -> (i32, i32) {
    %c0_i32 = arith.constant 0 : i32
    %c0_i32_0 = arith.constant 0 : i32
    %c0_i32_1 = arith.constant 0 : i32
    return %c0_i32, %c0_i32_0 : i32, i32
  }
  func.func @transform_5(%arg0: i32, %arg1: i32) -> (i32, i32) {
    %c0_i32 = arith.constant 0 : i32
    %c0_i32_0 = arith.constant 0 : i32
    return %arg1, %c0_i32 : i32, i32
  }
  func.func @transform_6(%arg0: i32, %arg1: i32) -> (i32, i32) {
    %c0_i32 = arith.constant 0 : i32
    %c0_i32_0 = arith.constant 0 : i32
    return %c0_i32, %arg1 : i32, i32
  }
  func.func @transform_7(%arg0: i32, %arg1: i32) -> (i32, i32) {
    %c0_i32 = arith.constant 0 : i32
    return %arg0, %arg1 : i32, i32
  }
}

</mosaic_0001>

<llo_original>
// kernel: tpu_custom_call.1
$region0: #{tpu_custom_call.1}
  #allocation0 [shape = 'u32[]', space=smem, size = 0x4, offset = 0x4, fixed_abs, tag = 'smem constant byte address 0x4 - core index']
  #allocation1 [shape = 'u32[144,128]{1,0:T(1,128)}', space=vmem, size = 0x12000, scoped, tag = 'internal scratch']
  #allocation2 [shape = 'f32[16,32]{1,0:T(8,128)}', space=vmem, size = 0x2000, scoped, tag = 'scratch operand']
  %s0 = inlined_call_operand.vmem [shape: f32[16,32], index: 0, kind: input, shape index: {}]
  %s1 = inlined_call_operand.vmem [shape: f32[32,32], index: 1, kind: input, shape index: {}]
  %s2 = inlined_call_operand.vmem [shape: f32[1,32], index: 2, kind: input, shape index: {}]
  %s3 = inlined_call_operand.vmem [shape: f32[1,32], index: 3, kind: input, shape index: {}]
  %s4 = inlined_call_operand.vmem [shape: f32[1,32], index: 4, kind: input, shape index: {}]
  %s5 = inlined_call_operand.vmem [shape: f32[256,32], index: 5, kind: input, shape index: {}]
  %s6 = inlined_call_operand.vmem [shape: f32[1,256], index: 6, kind: input, shape index: {}]
  %s7 = inlined_call_operand.hbm [shape: f32[16,256], index: 7, kind: output, shape index: {}]
  %s8 = sld [smem:[#allocation0]]
  $region42: #{tpu_custom_call.1} parent=0
    _
  %s10 = ssub.s32 1, %s8
  %s11 = scalar_select 0, %s10, %s8
  $region1: #{tpu_custom_call.1} parent=0
    #allocation3 [shape = 'u8[16384]{0}', space=vmem, size = 0x4000, scoped, tag = 'output window, operand 0, single buffered']
    #allocation4 [shape = 's32[1]{0}', space=sflag, size = 0x4, scoped, tag = 'scoped memory for tpu_custom_call.1']
    %12 = vsyncpa [#allocation4], 0
    // Predicated region
    $region2: #{tpu_custom_call.1} parent=1 // pred_check
      _
    $region3: #{tpu_custom_call.1} parent=1 // pred_check_branch
      %14 = sbr.rel (0) target = $region5
    $region4: #{tpu_custom_call.1} parent=1 // pred_region
      _
    $region5: #{tpu_custom_call.1} parent=1 // pred_fallthru
      _
    // Predicated region
    $region6: #{tpu_custom_call.1} parent=1 // pred_check
      _
    $region7: #{tpu_custom_call.1} parent=1 // pred_check_branch
      %16 = sbr.rel (0) target = $region9
    $region8: #{tpu_custom_call.1} parent=1 // pred_region
      _
    $region9: #{tpu_custom_call.1} parent=1 // pred_fallthru
      _
    // Predicated region
    $region10: #{tpu_custom_call.1} parent=1 // pred_check
      _
    $region11: #{tpu_custom_call.1} parent=1 // pred_check_branch
      %18 = sbr.rel (0) target = $region13
    $region12: #{tpu_custom_call.1} parent=1 // pred_region
      _
    $region13: #{tpu_custom_call.1} parent=1 // pred_fallthru
      _
    // Predicated region
    $region14: #{tpu_custom_call.1} parent=1 // pred_check
      _
    $region15: #{tpu_custom_call.1} parent=1 // pred_check_branch
      %20 = sbr.rel (0) target = $region17
    $region16: #{tpu_custom_call.1} parent=1 // pred_region
      _
    $region17: #{tpu_custom_call.1} parent=1 // pred_fallthru
      _
    // Predicated region
    $region18: #{tpu_custom_call.1} parent=1 // pred_check
      _
    $region19: #{tpu_custom_call.1} parent=1 // pred_check_branch
      %22 = sbr.rel (0) target = $region21
    $region20: #{tpu_custom_call.1} parent=1 // pred_region
      _
    $region21: #{tpu_custom_call.1} parent=1 // pred_fallthru
      _
    // Predicated region
    $region22: #{tpu_custom_call.1} parent=1 // pred_check
      _
    $region23: #{tpu_custom_call.1} parent=1 // pred_check_branch
      %24 = sbr.rel (0) target = $region25
    $region24: #{tpu_custom_call.1} parent=1 // pred_region
      _
    $region25: #{tpu_custom_call.1} parent=1 // pred_fallthru
      _
    // Predicated region
    $region26: #{tpu_custom_call.1} parent=1 // pred_check
      _
    $region27: #{tpu_custom_call.1} parent=1 // pred_check_branch
      %26 = sbr.rel (0) target = $region29
    $region28: #{tpu_custom_call.1} parent=1 // pred_region
      _
    $region29: #{tpu_custom_call.1} parent=1 // pred_fallthru
      _
    %p27 = scmp.eq.s32.totalorder 0, 0
    // Predicated region
    $region30: #{tpu_custom_call.1} parent=1 // pred_check
      %p28 = pneg %p27
    $region31: #{tpu_custom_call.1} parent=1 // pred_check_branch
      %30 = sbr.rel (%p28) target = $region33
    $region32: #{tpu_custom_call.1} parent=1 // pred_region
      %v31 = vld [vmem:[%s0] sm:$0xff]
      %v32 = vld [vmem:[%s0 + $0x8] sm:$0xff]
      %v33 = vld [vmem:[%s1] sm:$0xff]
      %v34 = vld [vmem:[%s1 + $0x8] sm:$0xff]
      %v35 = vld [vmem:[%s1 + $0x10] sm:$0xff]
      %v36 = vld [vmem:[%s1 + $0x18] sm:$0xff]
      %v37 = vld [vmem:[%s2] sm:$0x1]
      %v39 = vlaneseq
      %v40 = vshrl.u32 %v39, 7
      %v41 = vsub.s32 0, %v40
      %v42 = vrot.slane %v37, %v41
      %vm44 = vcmask 261120
      %v46 = vsel %vm44, %v31, 0
      %v49 = vsel %vm44, %v32, 0
      %v52 = vsel %vm44, %v33, 0
      %v55 = vsel %vm44, %v34, 0
      %v58 = vsel %vm44, %v35, 0
      %v61 = vsel %vm44, %v36, 0
      %63 = vmatprep.subr.mxu0 0.0
      %64 = vmatpush1.xpose.msra.mxu0 0.0
      %65 = vmatprep.subr.mxu0 0.0
      %66 = vmatpush1.xpose.msra.mxu0 0.0
      %67 = vmatprep.subr.mxu0 0.0
      %68 = vmatpush1.xpose.msra.mxu0 0.0
      %69 = vmatprep.subr.mxu0 0.0
      %70 = vmatpush1.xpose.msra.mxu0 0.0
      %71 = vmatprep.subr.mxu0 0.0
      %72 = vmatpush1.xpose.msra.mxu0 0.0
      %73 = vmatprep.subr.mxu0 0.0
      %74 = vmatpush1.xpose.msra.mxu0 0.0
      %75 = vmatprep.subr.mxu0 0.0
      %76 = vmatpush1.xpose.msra.mxu0 0.0
      %77 = vmatprep.subr.mxu0 0.0
      %78 = vmatpush1.xpose.msra.mxu0 0.0
      %79 = vmatprep.subr.mxu0 0.0
      %80 = vmatpush1.xpose.msra.mxu0 0.0
      %81 = vmatprep.subr.mxu0 0.0
      %82 = vmatpush1.xpose.msra.mxu0 0.0
      %83 = vmatprep.subr.mxu0 0.0
      %84 = vmatpush1.xpose.msra.mxu0 0.0
      %85 = vmatprep.subr.mxu0 0.0
      %86 = vmatpush1.xpose.msra.mxu0 0.0
      %87 = vmatprep.subr.mxu0 0.0
      %88 = vmatpush1.xpose.msra.mxu0 %v61
      %89 = vmatprep.subr.mxu0 0.0
      %90 = vmatpush1.xpose.msra.mxu0 %v58
      %91 = vmatprep.subr.mxu0 0.0
      %92 = vmatpush1.xpose.msra.mxu0 %v55
      %93 = vmatprep.subr.mxu0 0.0
      %94 = vmatpush1.xpose.msra.mxu0 %v52
      %95 = vmatprep.subr.mxu0 0.0
      %96 = vmatpush2.xpose.msra.mxu0 0.0
      %97 = vmatprep.subr.mxu0 0.0
      %98 = vmatpush2.xpose.msra.mxu0 0.0
      %99 = vmatprep.subr.mxu0 0.0
      %100 = vmatpush2.xpose.msra.mxu0 0.0
      %101 = vmatprep.subr.mxu0 0.0
      %102 = vmatpush2.xpose.msra.mxu0 0.0
      %103 = vmatprep.subr.mxu0 0.0
      %104 = vmatpush2.xpose.msra.mxu0 0.0
      %105 = vmatprep.subr.mxu0 0.0
      %106 = vmatpush2.xpose.msra.mxu0 0.0
      %107 = vmatprep.subr.mxu0 0.0
      %108 = vmatpush2.xpose.msra.mxu0 0.0
      %109 = vmatprep.subr.mxu0 0.0
      %110 = vmatpush2.xpose.msra.mxu0 0.0
      %111 = vmatprep.subr.mxu0 0.0
      %112 = vmatpush2.xpose.msra.mxu0 0.0
      %113 = vmatprep.subr.mxu0 0.0
      %114 = vmatpush2.xpose.msra.mxu0 0.0
      %115 = vmatprep.subr.mxu0 0.0
      %116 = vmatpush2.xpose.msra.mxu0 0.0
      %117 = vmatprep.subr.mxu0 0.0
      %118 = vmatpush2.xpose.msra.mxu0 0.0
      %119 = vmatprep.subr.mxu0 0.0
      %120 = vmatpush2.xpose.msra.mxu0 0.0
      %121 = vmatprep.subr.mxu0 0.0
      %122 = vmatpush2.xpose.msra.mxu0 0.0
      %123 = vmatprep.subr.mxu0 0.0
      %124 = vmatpush2.xpose.msra.mxu0 0.0
      %125 = vmatprep.subr.mxu0 0.0
      %126 = vmatpush2.xpose.msra.mxu0 0.0
      %127 = vmatprep.mubr.f32.mxu0 0.0
      %128 = vmatmul.mubr.f32.gmra.mxu0 %v46
      %v129 = vpop.f32.mrf.mxu0
      %v130 = vadd.f32 %v42, %v129
      %v131 = vpop.f32.mrf.mxu0
      %132 = vmatprep.mubr.f32.mxu0 0.0
      %133 = vmatmul.mubr.f32.gmra.mxu0 %v49
      %v134 = vpop.f32.mrf.mxu0
      %v135 = vadd.f32 %v42, %v134
      %v136 = vpop.f32.mrf.mxu0
      %137 = vdwg.mxu0
      %v138 = vmul.f32 %v130, 0.5
      %v139 = vmul.f32 %v135, 0.5
      %v140 = vmul.f32 %v130, 0.70710677
      %v141 = vmul.f32 %v135, 0.70710677
      %v142 = verf.f32.pop %v140
      %v143 = verf.f32.pop %v141
      %v144 = vadd.f32 %v142, 1.0
      %v145 = vadd.f32 %v143, 1.0
      %v146 = vmul.f32 %v138, %v144
      %v147 = vmul.f32 %v139, %v145
      %v148 = vsel %vm44, %v146, 0.0
      %149 = vadd.xlane.f32.xlu0 %v148
      %v150 = vpop.xlane.xlu0 %149
      %v151 = vsel %vm44, %v147, 0.0
      %152 = vadd.xlane.f32.xlu0 %v151
      %v153 = vpop.xlane.xlu0 %152
      %v154 = vrcp.pop 32.0
      %v155 = vmul.f32 %v150, %v154
      %v156 = vmul.f32 %v153, %v154
      %v157 = vsub.f32 %v146, %v155
      %v158 = vsub.f32 %v147, %v156
      %v159 = vmul.f32 %v157, %v157
      %v160 = vmul.f32 %v158, %v158
      %v161 = vsel %vm44, %v159, 0.0
      %162 = vadd.xlane.f32.xlu0 %v161
      %v163 = vpop.xlane.xlu0 %162
      %v164 = vsel %vm44, %v160, 0.0
      %165 = vadd.xlane.f32.xlu0 %v164
      %v166 = vpop.xlane.xlu0 %165
      %v167 = vmul.f32 %v163, %v154
      %v168 = vmul.f32 %v166, %v154
      %v169 = vadd.f32 %v167, 1e-12
      %v170 = vadd.f32 %v168, 1e-12
      %v171 = vrsqrt.pop %v169
      %v172 = vrsqrt.pop %v170
      %v173 = vmul.f32 %v157, %v171
      %v174 = vmul.f32 %v158, %v172
      %v175 = vld [vmem:[%s3] sm:$0x1]
      %v177 = vlaneseq
      %v178 = vshrl.u32 %v177, 7
      %v179 = vsub.s32 0, %v178
      %v180 = vrot.slane %v175, %v179
      %v182 = vmul.f32 %v173, %v180
      %v183 = vmul.f32 %v174, %v180
      %v184 = vld [vmem:[%s4] sm:$0x1]
      %v186 = vlaneseq
      %v187 = vshrl.u32 %v186, 7
      %v188 = vsub.s32 0, %v187
      %v189 = vrot.slane %v184, %v188
      %v191 = vadd.f32 %v182, %v189
      %v192 = vadd.f32 %v183, %v189
      %193 = vst.msk [vmem:[#allocation2] sm:$0xff] %vm44, %v191
      %194 = vst.msk [vmem:[#allocation2 + $0x8] sm:$0xff] %vm44, %v192
    $region33: #{tpu_custom_call.1} parent=1 // pred_fallthru
      _
    %v195 = vld [vmem:[#allocation2] sm:$0xff]
    %v196 = vld [vmem:[#allocation2 + $0x8] sm:$0xff]
    %v197 = vld [vmem:[%s5] sm:$0xff]
    %v198 = vld [vmem:[%s5 + $0x8] sm:$0xff]
    %v199 = vld [vmem:[%s5 + $0x10] sm:$0xff]
    %v200 = vld [vmem:[%s5 + $0x18] sm:$0xff]
    %v201 = vld [vmem:[%s5 + $0x20] sm:$0xff]
    %v202 = vld [vmem:[%s5 + $0x28] sm:$0xff]
    %v203 = vld [vmem:[%s5 + $0x30] sm:$0xff]
    %v204 = vld [vmem:[%s5 + $0x38] sm:$0xff]
    %v205 = vld [vmem:[%s5 + $0x40] sm:$0xff]
    %v206 = vld [vmem:[%s5 + $0x48] sm:$0xff]
    %v207 = vld [vmem:[%s5 + $0x50] sm:$0xff]
    %v208 = vld [vmem:[%s5 + $0x58] sm:$0xff]
    %v209 = vld [vmem:[%s5 + $0x60] sm:$0xff]
    %v210 = vld [vmem:[%s5 + $0x68] sm:$0xff]
    %v211 = vld [vmem:[%s5 + $0x70] sm:$0xff]
    %v212 = vld [vmem:[%s5 + $0x78] sm:$0xff]
    %v213 = vld [vmem:[%s5 + $0x80] sm:$0xff]
    %v214 = vld [vmem:[%s5 + $0x88] sm:$0xff]
    %v215 = vld [vmem:[%s5 + $0x90] sm:$0xff]
    %v216 = vld [vmem:[%s5 + $0x98] sm:$0xff]
    %v217 = vld [vmem:[%s5 + $0xa0] sm:$0xff]
    %v218 = vld [vmem:[%s5 + $0xa8] sm:$0xff]
    %v219 = vld [vmem:[%s5 + $0xb0] sm:$0xff]
    %v220 = vld [vmem:[%s5 + $0xb8] sm:$0xff]
    %v221 = vld [vmem:[%s5 + $0xc0] sm:$0xff]
    %v222 = vld [vmem:[%s5 + $0xc8] sm:$0xff]
    %v223 = vld [vmem:[%s5 + $0xd0] sm:$0xff]
    %v224 = vld [vmem:[%s5 + $0xd8] sm:$0xff]
    %v225 = vld [vmem:[%s5 + $0xe0] sm:$0xff]
    %v226 = vld [vmem:[%s5 + $0xe8] sm:$0xff]
    %v227 = vld [vmem:[%s5 + $0xf0] sm:$0xff]
    %v228 = vld [vmem:[%s5 + $0xf8] sm:$0xff]
    %v229 = vld [vmem:[%s6] sm:$0x3]
    %v231 = vlaneseq
    %v232 = vshrl.u32 %v231, 7
    %v233 = vsub.s32 0, %v232
    %v234 = vrot.slane %v229, %v233
    %v235 = vlaneseq
    %v236 = vshrl.u32 %v235, 7
    %v237 = vsub.s32 1, %v236
    %v238 = vrot.slane %v229, %v237
    %vm241 = vcmask 261120
    %v243 = vsel %vm241, %v195, 0
    %v246 = vsel %vm241, %v196, 0
    %v249 = vsel %vm241, %v197, 0
    %v252 = vsel %vm241, %v198, 0
    %v255 = vsel %vm241, %v199, 0
    %v258 = vsel %vm241, %v200, 0
    %v261 = vsel %vm241, %v201, 0
    %v264 = vsel %vm241, %v202, 0
    %v267 = vsel %vm241, %v203, 0
    %v270 = vsel %vm241, %v204, 0
    %v273 = vsel %vm241, %v205, 0
    %v276 = vsel %vm241, %v206, 0
    %v279 = vsel %vm241, %v207, 0
    %v282 = vsel %vm241, %v208, 0
    %v285 = vsel %vm241, %v209, 0
    %v288 = vsel %vm241, %v210, 0
    %v291 = vsel %vm241, %v211, 0
    %v294 = vsel %vm241, %v212, 0
    %v297 = vsel %vm241, %v213, 0
    %v300 = vsel %vm241, %v214, 0
    %v303 = vsel %vm241, %v215, 0
    %v306 = vsel %vm241, %v216, 0
    %v309 = vsel %vm241, %v217, 0
    %v312 = vsel %vm241, %v218, 0
    %v315 = vsel %vm241, %v219, 0
    %v318 = vsel %vm241, %v220, 0
    %v321 = vsel %vm241, %v221, 0
    %v324 = vsel %vm241, %v222, 0
    %v327 = vsel %vm241, %v223, 0
    %v330 = vsel %vm241, %v224, 0
    %v333 = vsel %vm241, %v225, 0
    %v336 = vsel %vm241, %v226, 0
    %v339 = vsel %vm241, %v227, 0
    %v342 = vsel %vm241, %v228, 0
    %344 = vmatprep.subr.mxu0 0.0
    %345 = vmatpush1.xpose.msra.mxu0 %v294
    %346 = vmatprep.subr.mxu0 0.0
    %347 = vmatpush1.xpose.msra.mxu0 %v291
    %348 = vmatprep.subr.mxu0 0.0
    %349 = vmatpush1.xpose.msra.mxu0 %v288
    %350 = vmatprep.subr.mxu0 0.0
    %351 = vmatpush1.xpose.msra.mxu0 %v285
    %352 = vmatprep.subr.mxu0 0.0
    %353 = vmatpush1.xpose.msra.mxu0 %v282
    %354 = vmatprep.subr.mxu0 0.0
    %355 = vmatpush1.xpose.msra.mxu0 %v279
    %356 = vmatprep.subr.mxu0 0.0
    %357 = vmatpush1.xpose.msra.mxu0 %v276
    %358 = vmatprep.subr.mxu0 0.0
    %359 = vmatpush1.xpose.msra.mxu0 %v273
    %360 = vmatprep.subr.mxu0 0.0
    %361 = vmatpush1.xpose.msra.mxu0 %v270
    %362 = vmatprep.subr.mxu0 0.0
    %363 = vmatpush1.xpose.msra.mxu0 %v267
    %364 = vmatprep.subr.mxu0 0.0
    %365 = vmatpush1.xpose.msra.mxu0 %v264
    %366 = vmatprep.subr.mxu0 0.0
    %367 = vmatpush1.xpose.msra.mxu0 %v261
    %368 = vmatprep.subr.mxu0 0.0
    %369 = vmatpush1.xpose.msra.mxu0 %v258
    %370 = vmatprep.subr.mxu0 0.0
    %371 = vmatpush1.xpose.msra.mxu0 %v255
    %372 = vmatprep.subr.mxu0 0.0
    %373 = vmatpush1.xpose.msra.mxu0 %v252
    %374 = vmatprep.subr.mxu0 0.0
    %375 = vmatpush1.xpose.msra.mxu0 %v249
    %376 = vmatprep.subr.mxu0 0.0
    %377 = vmatpush2.xpose.msra.mxu0 %v342
    %378 = vmatprep.subr.mxu0 0.0
    %379 = vmatpush2.xpose.msra.mxu0 %v339
    %380 = vmatprep.subr.mxu0 0.0
    %381 = vmatpush2.xpose.msra.mxu0 %v336
    %382 = vmatprep.subr.mxu0 0.0
    %383 = vmatpush2.xpose.msra.mxu0 %v333
    %384 = vmatprep.subr.mxu0 0.0
    %385 = vmatpush2.xpose.msra.mxu0 %v330
    %386 = vmatprep.subr.mxu0 0.0
    %387 = vmatpush2.xpose.msra.mxu0 %v327
    %388 = vmatprep.subr.mxu0 0.0
    %389 = vmatpush2.xpose.msra.mxu0 %v324
    %390 = vmatprep.subr.mxu0 0.0
    %391 = vmatpush2.xpose.msra.mxu0 %v321
    %392 = vmatprep.subr.mxu0 0.0
    %393 = vmatpush2.xpose.msra.mxu0 %v318
    %394 = vmatprep.subr.mxu0 0.0
    %395 = vmatpush2.xpose.msra.mxu0 %v315
    %396 = vmatprep.subr.mxu0 0.0
    %397 = vmatpush2.xpose.msra.mxu0 %v312
    %398 = vmatprep.subr.mxu0 0.0
    %399 = vmatpush2.xpose.msra.mxu0 %v309
    %400 = vmatprep.subr.mxu0 0.0
    %401 = vmatpush2.xpose.msra.mxu0 %v306
    %402 = vmatprep.subr.mxu0 0.0
    %403 = vmatpush2.xpose.msra.mxu0 %v303
    %404 = vmatprep.subr.mxu0 0.0
    %405 = vmatpush2.xpose.msra.mxu0 %v300
    %406 = vmatprep.subr.mxu0 0.0
    %407 = vmatpush2.xpose.msra.mxu0 %v297
    %408 = vmatprep.mubr.f32.mxu0 0.0
    %409 = vmatmul.mubr.f32.gmra.mxu0 %v243
    %v410 = vpop.f32.mrf.mxu0
    %v411 = vadd.f32 %v234, %v410
    %v412 = vpop.f32.mrf.mxu0
    %v413 = vadd.f32 %v238, %v412
    %414 = vmatprep.mubr.f32.mxu0 0.0
    %415 = vmatmul.mubr.f32.gmra.mxu0 %v246
    %v416 = vpop.f32.mrf.mxu0
    %v417 = vadd.f32 %v234, %v416
    %v418 = vpop.f32.mrf.mxu0
    %v419 = vadd.f32 %v238, %v418
    %420 = vdwg.mxu0
    %421 = vst [vmem:[#allocation3] sm:$0xff] %v411
    %422 = vst [vmem:[#allocation3 + $0x8] sm:$0xff] %v413
    %423 = vst [vmem:[#allocation3 + $0x10] sm:$0xff] %v417
    %424 = vst [vmem:[#allocation3 + $0x18] sm:$0xff] %v419
    // Predicated region
    $region34: #{tpu_custom_call.1} parent=1 // pred_check
      _
    $region35: #{tpu_custom_call.1} parent=1 // pred_check_branch
      %426 = sbr.rel (0) target = $region37
    $region36: #{tpu_custom_call.1} parent=1 // pred_region
      %s428 = ssub.s32 512, 512
      %429 = vsyncadd [#allocation4], %s428
      %s430 = sshll.u32 [#allocation3], 4
      %s431 = int_to_ptr.vmem [resolvable:$true] %s430
      %436 = dma.vmem_to_hbm [thread:$0]  %s431, 512, %s7, [#allocation4], 256, 256, 16
    $region37: #{tpu_custom_call.1} parent=1 // pred_fallthru
      _
    // Predicated region
    $region38: #{tpu_custom_call.1} parent=1 // pred_check
      _
    $region39: #{tpu_custom_call.1} parent=1 // pred_check_branch
      %438 = sbr.rel (0) target = $region41
    $region40: #{tpu_custom_call.1} parent=1 // pred_region
      %439 = dma.done [#allocation4], 512
    $region41: #{tpu_custom_call.1} parent=1 // pred_fallthru
      _
    %440 = vsyncpa [#allocation4], 1

</llo_original>
